<compile_context>
chip_gen: v7x
topology: tpu7x:2x2x1
jax: 0.10.0
libtpu: 0.0.40
codegen_flags: <defaults>
</compile_context>

<pallas_src>
import functools
import math

import jax
import jax.numpy as jnp
from jax.experimental import pallas as pl
from jax.experimental.pallas import tpu as pltpu


# --------------------------------------------------------------------------
# Kernel A: fused QKV projection (x @ W_qkv, scale pre-folded into Q columns)
# --------------------------------------------------------------------------
def _qkv_proj_kernel(x_ref, w_ref, q_ref, kv_ref):
    inner = q_ref.shape[-1]
    qkv = jnp.dot(x_ref[...], w_ref[...], preferred_element_type=jnp.float32)
    q_ref[...] = qkv[:, :inner].astype(q_ref.dtype)      # column split at a
    kv_ref[...] = qkv[:, inner:].astype(kv_ref.dtype)    # multiple of `inner`


# --------------------------------------------------------------------------
# Kernel B: flash attention (online softmax over KV tiles) + output projection
# --------------------------------------------------------------------------
def _flash_attn_kernel(*refs, heads, dim_head, project_out):
    if project_out:
        (q_ref, kv_ref, wout_ref, bout_ref, o_ref,
         m_sc, l_sc, acc_sc) = refs
    else:
        q_ref, kv_ref, o_ref, m_sc, l_sc, acc_sc = refs
        wout_ref = bout_ref = None

    kvi = pl.program_id(2)
    inner = heads * dim_head
    tq = q_ref.shape[0]
    tkv = kv_ref.shape[0]

    @pl.when(kvi == 0)
    def _():
        m_sc[...] = jnp.full_like(m_sc, -jnp.inf)
        l_sc[...] = jnp.zeros_like(l_sc)
        acc_sc[...] = jnp.zeros_like(acc_sc)

    kv = kv_ref[...]                                     # (TKV, 2*inner) bf16
    q3 = q_ref[...].reshape(tq, heads, dim_head)         # (TQ,  H, d) bf16 (pre-scaled)
    k3 = kv[:, :inner].reshape(tkv, heads, dim_head)     # (TKV, H, d) bf16
    v3 = kv[:, inner:].reshape(tkv, heads, dim_head)     # (TKV, H, d) bf16

    # Heads-batched score matmul, no explicit k.T; f32 accumulation.
    s = jnp.einsum("qhd,khd->hqk", q3, k3,
                   preferred_element_type=jnp.float32)   # (H, TQ, TKV) f32

    # Online softmax (running max / sum / accumulator in f32 scratch).
    m_prev = m_sc[...]                                   # (H, TQ, 1)
    m_new = jnp.maximum(m_prev, jnp.max(s, axis=-1, keepdims=True))
    alpha = jnp.exp(m_prev - m_new)
    p = jnp.exp(s - m_new)                               # f32 probabilities
    l_sc[...] = alpha * l_sc[...] + jnp.sum(p, axis=-1, keepdims=True)
    acc_sc[...] = alpha * acc_sc[...] + jnp.einsum(
        "hqk,khd->hqd", p.astype(v3.dtype), v3,          # bf16 probs on the MXU
        preferred_element_type=jnp.float32)
    m_sc[...] = m_new

    @pl.when(kvi == pl.num_programs(2) - 1)
    def _():
        # Deferred normalization on the small (H, TQ, d) accumulator (EUP recip).
        o = acc_sc[...] * pl.reciprocal(l_sc[...], approx=True)
        o = jnp.transpose(o, (1, 0, 2)).reshape(tq, inner)       # 'h q d -> q (h d)'
        if project_out:
            o = (jnp.dot(o.astype(wout_ref.dtype), wout_ref[...],
                         preferred_element_type=jnp.float32)
                 + bout_ref[...].astype(jnp.float32))
        # Dropout(p=0.0) is the identity.
        o_ref[...] = o.astype(o_ref.dtype)


# --------------------------------------------------------------------------
# Wrapper
# --------------------------------------------------------------------------
def attention_forward(x, params, *, heads, dim_head, tq=None, tkv=None, tm=None):
    """x: (B, N, dim). params: w_qkv (dim, 3*inner), [w_out (inner, dim), b_out (1, dim)]."""
    B, N, dim = x.shape
    inner = heads * dim_head
    scale = dim_head ** (-0.5)
    project_out = not (heads == 1 and dim_head == dim)
    cdt = jnp.bfloat16
    itemsz = 2  # bf16

    # Tile sizes (query / kv / projection row tiles). For production N these stay
    # bounded so scores are at most (H, TQ, TKV) regardless of sequence length.
    tq = tq or min(N, 256)
    tkv = tkv or min(N, 256)
    tm = tm or min(N, 256)
    assert N % tq == 0 and N % tkv == 0 and N % tm == 0, "N must divide tile sizes"

    # Fold the softmax scale into the Q columns of W_qkv (free), cast to bf16.
    w_qkv = params["w_qkv"]
    w_qkv_c = jnp.concatenate(
        [w_qkv[:, :inner] * scale, w_qkv[:, inner:]], axis=-1).astype(cdt)
    x_c = x.astype(cdt)

    # ---- Kernel A: QKV projection (full-MXU matmul, bf16 intermediates) ----
    proj_flops = 2 * B * N * dim * 3 * inner
    proj_bytes = (x_c.size + w_qkv_c.size + B * N * 3 * inner) * itemsz
    q_all, kv_all = pl.pallas_call(
        _qkv_proj_kernel,
        out_shape=(jax.ShapeDtypeStruct((B, N, inner), cdt),
                   jax.ShapeDtypeStruct((B, N, 2 * inner), cdt)),
        grid_spec=pltpu.PrefetchScalarGridSpec(
            num_scalar_prefetch=0,
            grid=(B, N // tm),
            in_specs=[
                pl.BlockSpec((None, tm, dim), lambda b, m: (b, m, 0)),
                pl.BlockSpec((dim, 3 * inner), lambda b, m: (0, 0)),
            ],
            out_specs=[
                pl.BlockSpec((None, tm, inner), lambda b, m: (b, m, 0)),
                pl.BlockSpec((None, tm, 2 * inner), lambda b, m: (b, m, 0)),
            ],
        ),
        compiler_params=pltpu.CompilerParams(
            dimension_semantics=("parallel", "parallel")),
        cost_estimate=pl.CostEstimate(
            flops=int(proj_flops), transcendentals=0,
            bytes_accessed=int(proj_bytes)),
    )(x_c, w_qkv_c)

    # ---- Kernel B: flash attention + output projection ----
    kernel = functools.partial(
        _flash_attn_kernel, heads=heads, dim_head=dim_head,
        project_out=project_out)

    in_specs = [
        pl.BlockSpec((None, tq, inner), lambda b, qi, ki: (b, qi, 0)),        # Q tile
        pl.BlockSpec((None, tkv, 2 * inner), lambda b, qi, ki: (b, ki, 0)),   # KV tile
    ]
    args = [q_all, kv_all]
    if project_out:
        w_out_c = params["w_out"].astype(cdt)
        b_out_c = params["b_out"].astype(jnp.float32)
        # TODO(synk): pipeline_mode=pl.Buffered(1) for the constant-index weight
        # blocks once tiles are sized for production dims (halves their VMEM).
        in_specs += [
            pl.BlockSpec((inner, dim), lambda b, qi, ki: (0, 0)),
            pl.BlockSpec((1, dim), lambda b, qi, ki: (0, 0)),
        ]
        args += [w_out_c, b_out_c]

    out_specs = pl.BlockSpec((None, tq, dim), lambda b, qi, ki: (b, qi, 0))

    nq, nkv = N // tq, N // tkv
    attn_flops = B * (4 * heads * N * N * dim_head
                      + (2 * N * inner * dim if project_out else 0))
    attn_bytes = (B * N * inner * itemsz                 # Q read
                  + B * nq * N * 2 * inner * itemsz      # KV streamed per q tile
                  + B * N * dim * 4                      # f32 output
                  + sum(int(a.size) * jnp.dtype(a.dtype).itemsize
                        for a in args[2:]))

    out = pl.pallas_call(
        kernel,
        out_shape=jax.ShapeDtypeStruct((B, N, dim), x.dtype),
        grid_spec=pltpu.PrefetchScalarGridSpec(
            num_scalar_prefetch=0,
            grid=(B, nq, nkv),
            in_specs=in_specs,
            out_specs=out_specs,
            scratch_shapes=[
                pltpu.VMEM((heads, tq, 1), jnp.float32),          # running max
                pltpu.VMEM((heads, tq, 1), jnp.float32),          # running sum
                pltpu.VMEM((heads, tq, dim_head), jnp.float32),   # accumulator
            ],
        ),
        compiler_params=pltpu.CompilerParams(
            dimension_semantics=("parallel", "parallel", "arbitrary")),
        cost_estimate=pl.CostEstimate(
            flops=int(attn_flops),
            transcendentals=int(B * heads * N * N),
            bytes_accessed=int(attn_bytes)),
    )(*args)
    return out


def init_params(key, dim, heads, dim_head):
    """PyTorch nn.Linear default init: U[-1/sqrt(fan_in), 1/sqrt(fan_in)]."""
    inner = heads * dim_head
    ks = jax.random.split(key, 3)
    b_qkv = 1.0 / math.sqrt(dim)
    params = {
        "w_qkv": jax.random.uniform(ks[0], (dim, 3 * inner), jnp.float32,
                                    -b_qkv, b_qkv),
    }
    if not (heads == 1 and dim_head == dim):
        b_o = 1.0 / math.sqrt(inner)
        params["w_out"] = jax.random.uniform(ks[1], (inner, dim), jnp.float32,
                                             -b_o, b_o)
        params["b_out"] = jax.random.uniform(ks[2], (1, dim), jnp.float32,
                                             -b_o, b_o)
    return params


def _reference(x, params, *, heads, dim_head):
    """Pure-JAX reference (f32 math on bf16-rounded inputs/weights, matching
    the kernel's storage precision)."""
    f32, bf16 = jnp.float32, jnp.bfloat16
    B, N, dim = x.shape
    inner = heads * dim_head
    scale = dim_head ** (-0.5)
    xc = x.astype(bf16).astype(f32)
    wqkv = params["w_qkv"].astype(bf16).astype(f32)
    qkv = xc @ wqkv
    q, k, v = jnp.split(qkv, 3, axis=-1)
    split = lambda t: t.reshape(B, N, heads, dim_head).transpose(0, 2, 1, 3)
    q, k, v = split(q), split(k), split(v)
    dots = jnp.einsum("bhnd,bhmd->bhnm", q, k) * scale
    attn = jax.nn.softmax(dots, axis=-1)
    o = jnp.einsum("bhnm,bhmd->bhnd", attn, v)
    o = o.transpose(0, 2, 1, 3).reshape(B, N, inner)
    if "w_out" in params:
        wout = params["w_out"].astype(bf16).astype(f32)
        o = o @ wout + params["b_out"]
    return o


if __name__ == "__main__":
    key = jax.random.PRNGKey(0)
    k_x, k_p = jax.random.split(key)

    # Small but lane-dense shapes: dim = heads*dim_head = 128 (full vreg lanes).
    B, N, dim = 2, 16, 128
    heads, dim_head = 8, 16

    x = jax.random.normal(k_x, (B, N, dim), jnp.float32)
    params = init_params(k_p, dim, heads, dim_head)

    out = attention_forward(x, params, heads=heads, dim_head=dim_head)
    out = jax.block_until_ready(out)

    ref = _reference(x, params, heads=heads, dim_head=dim_head)
    assert out.shape == (B, N, dim)
    max_err = float(jnp.max(jnp.abs(out - ref)))
    assert jnp.allclose(out, ref, atol=2e-2, rtol=2e-2), (
        f"mismatch vs reference (max |err| = {max_err})")

    print("KERNEL_OK")
</pallas_src>

<mosaic_0001>
module attributes {stable_mosaic.version = 11 : i64} {
  func.func @_qkv_proj_kernel(%arg0: i32, %arg1: i32, %arg2: memref<1x16x128xbf16, #tpu.memory_space<vmem>>, %arg3: memref<128x384xbf16, #tpu.memory_space<vmem>>, %arg4: memref<1x16x128xbf16, #tpu.memory_space<vmem>>, %arg5: memref<1x16x256xbf16, #tpu.memory_space<vmem>>) attributes {dimension_semantics = [#tpu.dimension_semantics<parallel>, #tpu.dimension_semantics<parallel>], iteration_bounds = array<i64: 2, 1>, scalar_prefetch = 0 : i64, scratch_operands = 0 : i64, tpu.core_type = #tpu.core_type<tc>, window_params = [{transform_indices = @transform_0, window_bounds = array<i64: 1, 16, 128>}, {pipeline_mode = #tpu.pipeline_mode<synchronous>, transform_indices = @transform_1, window_bounds = array<i64: 128, 384>}, {transform_indices = @transform_2, window_bounds = array<i64: 1, 16, 128>}, {transform_indices = @transform_3, window_bounds = array<i64: 1, 16, 256>}]} {
    %c0 = arith.constant 0 : index
    %c0_0 = arith.constant 0 : index
    %c0_1 = arith.constant 0 : index
    %0 = vector.load %arg2[%c0, %c0_0, %c0_1] : memref<1x16x128xbf16, #tpu.memory_space<vmem>>, vector<1x16x128xbf16>
    %1 = vector.shape_cast %0 : vector<1x16x128xbf16> to vector<16x128xbf16>
    %c0_2 = arith.constant 0 : index
    %c0_3 = arith.constant 0 : index
    %2 = vector.load %arg3[%c0_2, %c0_3] : memref<128x384xbf16, #tpu.memory_space<vmem>>, vector<128x384xbf16>
    %cst = arith.constant dense<0.000000e+00> : vector<16x384xf32>
    %3 = tpu.matmul %1, %2, %cst {dimension_numbers = #tpu.dot_dimension_numbers<[1], [0], [0], [1], [0, 0, 1, 1], [], []>} : vector<16x128xbf16>, vector<128x384xbf16>, vector<16x384xf32> -> vector<16x384xf32>
    %4 = vector.extract_strided_slice %3 {offsets = [0, 0], sizes = [16, 128], strides = [1, 1]} : vector<16x384xf32> to vector<16x128xf32>
    %5 = arith.truncf %4 : vector<16x128xf32> to vector<16x128xbf16>
    %c0_4 = arith.constant 0 : index
    %c0_5 = arith.constant 0 : index
    %c0_6 = arith.constant 0 : index
    %6 = vector.load %arg4[%c0_4, %c0_5, %c0_6] : memref<1x16x128xbf16, #tpu.memory_space<vmem>>, vector<1x16x128xbf16>
    %7 = vector.shape_cast %6 : vector<1x16x128xbf16> to vector<16x128xbf16>
    %8 = vector.shape_cast %5 : vector<16x128xbf16> to vector<1x16x128xbf16>
    tpu.vector_store %arg4[%c0_4, %c0_5, %c0_6], %8 {strides = array<i32>} : memref<1x16x128xbf16, #tpu.memory_space<vmem>>, vector<1x16x128xbf16>,
    %9 = vector.extract_strided_slice %3 {offsets = [0, 128], sizes = [16, 256], strides = [1, 1]} : vector<16x384xf32> to vector<16x256xf32>
    %10 = arith.truncf %9 : vector<16x256xf32> to vector<16x256xbf16>
    %c0_7 = arith.constant 0 : index
    %c0_8 = arith.constant 0 : index
    %c0_9 = arith.constant 0 : index
    %11 = vector.load %arg5[%c0_7, %c0_8, %c0_9] : memref<1x16x256xbf16, #tpu.memory_space<vmem>>, vector<1x16x256xbf16>
    %12 = vector.shape_cast %11 : vector<1x16x256xbf16> to vector<16x256xbf16>
    %13 = vector.shape_cast %10 : vector<16x256xbf16> to vector<1x16x256xbf16>
    tpu.vector_store %arg5[%c0_7, %c0_8, %c0_9], %13 {strides = array<i32>} : memref<1x16x256xbf16, #tpu.memory_space<vmem>>, vector<1x16x256xbf16>,
    return
  }
  func.func @transform_0(%arg0: i32, %arg1: i32) -> (i32, i32, i32) {
    %c0_i32 = arith.constant 0 : i32
    %c0_i32_0 = arith.constant 0 : i32
    return %arg0, %arg1, %c0_i32 : i32, i32, i32
  }
  func.func @transform_1(%arg0: i32, %arg1: i32) -> (i32, i32) {
    %c0_i32 = arith.constant 0 : i32
    %c0_i32_0 = arith.constant 0 : i32
    %c0_i32_1 = arith.constant 0 : i32
    return %c0_i32, %c0_i32_0 : i32, i32
  }
  func.func @transform_2(%arg0: i32, %arg1: i32) -> (i32, i32, i32) {
    %c0_i32 = arith.constant 0 : i32
    %c0_i32_0 = arith.constant 0 : i32
    return %arg0, %arg1, %c0_i32 : i32, i32, i32
  }
  func.func @transform_3(%arg0: i32, %arg1: i32) -> (i32, i32, i32) {
    %c0_i32 = arith.constant 0 : i32
    %c0_i32_0 = arith.constant 0 : i32
    return %arg0, %arg1, %c0_i32 : i32, i32, i32
  }
}

</mosaic_0001>

<llo_original>
// kernel: tpu_custom_call.1
$region0: #{tpu_custom_call.1}
  #allocation0 [shape = 'u32[]', space=smem, size = 0x4, offset = 0x4, fixed_abs, tag = 'smem constant byte address 0x4 - core index']
  #allocation1 [shape = 'u32[144,128]{1,0:T(1,128)}', space=vmem, size = 0x12000, scoped, tag = 'internal scratch']
  %s0 = inlined_call_operand.hbm [shape: bf16[2,16,128], index: 0, kind: input, shape index: {}]
  %s1 = inlined_call_operand.hbm [shape: bf16[128,384], index: 1, kind: input, shape index: {}]
  %s2 = inlined_call_operand.hbm [shape: bf16[2,16,128], index: 2, kind: output, shape index: {0}]
  %s3 = inlined_call_operand.hbm [shape: bf16[2,16,256], index: 3, kind: output, shape index: {1}]
  %4 = xla_tuple %s2, %s3
  %s5 = sld [smem:[#allocation0]]
  $region57: #{tpu_custom_call.1} parent=0
    _
  %s7 = ssub.s32 1, %s5
  %s8 = scalar_select 0, %s7, %s5
  $region1: #{tpu_custom_call.1} parent=0
    #allocation2 [shape = 'u8[8192]{0}', space=vmem, size = 0x2000, scoped, tag = 'input window, operand 0']
    #allocation3 [shape = 's32[2]{0}', space=sflag, size = 0x8, scoped, tag = 'scoped memory for tpu_custom_call.1']
    #allocation4 [shape = 's32[2]{0}', space=sflag, size = 0x8, scoped, tag = 'scoped memory for tpu_custom_call.1']
    #allocation5 [shape = 'u8[98304]{0}', space=vmem, size = 0x18000, scoped, tag = 'input window, operand 1, single buffered']
    #allocation6 [shape = 's32[1]{0}', space=sflag, size = 0x4, scoped, tag = 'scoped memory for tpu_custom_call.1']
    #allocation7 [shape = 'u8[8192]{0}', space=vmem, size = 0x2000, scoped, tag = 'output window, operand 0']
    #allocation8 [shape = 'u8[16384]{0}', space=vmem, size = 0x4000, scoped, tag = 'output window, operand 1']
    #allocation9 [shape = 's32[2]{0}', space=sflag, size = 0x8, scoped, tag = 'scoped memory for tpu_custom_call.1']
    %9 = vsyncpa [#allocation3], 0
    %s10 = scalar_lea.sflag [#allocation3], 1
    %11 = vsyncpa %s10, 0
    %12 = vsyncpa [#allocation6], 0
    %13 = vsyncpa [#allocation4], 0
    %s14 = scalar_lea.sflag [#allocation4], 1
    %15 = vsyncpa %s14, 0
    %16 = vsyncpa [#allocation9], 0
    %s17 = scalar_lea.sflag [#allocation9], 1
    %18 = vsyncpa %s17, 0
    loop: start=0, step=1, limit=4
    $region2: #{tpu_custom_call.1} parent=1 // loop_pre_header
      _
    $region3: #{tpu_custom_call.1} parent=1 // loop_header
      %s20 = sphi 0, %s24
      %p21 = scmp.ge.s32.totalorder %s20, 4
      %s27 = sphi 0, %s39
      %s28 = sphi 0, %s35
      %s29 = sphi 0, %s27
      %s30 = sphi 0, %s28
      %s31 = sphi 0, %s29
      %s32 = sphi 0, %s30
      %s44 = sphi 0, %s46
      %s47 = sphi 0, %s44
      %s48 = sphi 0, %s47
      %s64 = sphi 0, %s48
      %s68 = sphi 0, %s68
      %s70 = sphi 0, %s68
      %s71 = sphi 0, %s70
      %s85 = sphi 0, %s71
      %s93 = sphi 0, %s95
      %s96 = sphi 0, %s93
      %s97 = sphi 0, %s96
      %s113 = sphi 0, %s97
      %s121 = sphi 0, %s123
      %s124 = sphi 0, %s121
      %s125 = sphi 0, %s124
      %s141 = sphi 0, %s125
    $region4: #{tpu_custom_call.1} parent=1 // loop_header_branch
      %23 = sbr.rel (%p21) target = $region8
    $region5: #{tpu_custom_call.1} parent=1 // loop_body
      %s25 = ssub.s32 %s20, 1
      %s26 = ssub.s32 %s20, 2
      %s33 = sadd.s32 1, %s28
      %p34 = scmp.ge.s32.totalorder %s33, 1
      %s35 = scalar_select %p34, 0, %s33
      %s36 = sadd.s32 1, %s27
      %s37 = scalar_select %p34, %s36, %s27
      %p38 = scmp.ge.s32.totalorder %s37, 2
      %s39 = scalar_select %p38, 0, %s37
      %s40 = ssub.s32 %s27, %s39
      %s41 = ssub.s32 %s28, %s35
      %s42 = sor.u32 %s40, %s41
      %p43 = scmp.eq.s32.totalorder %s42, 0
      %s45 = sadd.s32 %s44, 1
      %s46 = scalar_select %p43, %s44, %s45
      %p49 = pneg %p43
      %p50 = scmp.eq.s32.totalorder %s20, 1
      %p51 = por %p49, %p50
      %p52 = scmp.ne.s32.totalorder %s44, %s47
      %p53 = scmp.eq.s32.totalorder %s20, 0
      %p54 = por %p52, %p53
      %p55 = scmp.ne.s32.totalorder %s44, %s47
      %p56 = scmp.eq.s32.totalorder %s25, 1
      %p57 = por %p55, %p56
      %p58 = scmp.ne.s32.totalorder %s47, %s48
      %p59 = scmp.eq.s32.totalorder %s25, 0
      %p60 = por %p58, %p59
      %p61 = scmp.ne.s32.totalorder %s47, %s48
      %p62 = scmp.eq.s32.totalorder %s26, 1
      %p63 = por %p61, %p62
      %p65 = scmp.ne.s32.totalorder %s48, %s64
      %p66 = scmp.eq.s32.totalorder %s26, 0
      %p67 = por %p65, %p66
      %s69 = sadd.s32 %s68, 1
      %p72 = scmp.eq.s32.totalorder %s20, 1
      %p73 = scmp.ne.s32.totalorder %s68, %s70
      %p74 = scmp.eq.s32.totalorder %s20, 0
      %p75 = por %p73, %p74
      %p76 = scmp.ne.s32.totalorder %s68, %s70
      %p77 = scmp.eq.s32.totalorder %s25, 1
      %p78 = por %p76, %p77
      %p79 = scmp.ne.s32.totalorder %s70, %s71
      %p80 = scmp.eq.s32.totalorder %s25, 0
      %p81 = por %p79, %p80
      %p82 = scmp.ne.s32.totalorder %s70, %s71
      %p83 = scmp.eq.s32.totalorder %s26, 1
      %p84 = por %p82, %p83
      %p86 = scmp.ne.s32.totalorder %s71, %s85
      %p87 = scmp.eq.s32.totalorder %s26, 0
      %p88 = por %p86, %p87
      %s89 = ssub.s32 %s27, %s39
      %s90 = ssub.s32 %s28, %s35
      %s91 = sor.u32 %s89, %s90
      %p92 = scmp.eq.s32.totalorder %s91, 0
      %s94 = sadd.s32 %s93, 1
      %s95 = scalar_select %p92, %s93, %s94
      %p98 = pneg %p92
      %p99 = scmp.eq.s32.totalorder %s20, 1
      %p100 = por %p98, %p99
      %p101 = scmp.ne.s32.totalorder %s93, %s96
      %p102 = scmp.eq.s32.totalorder %s20, 0
      %p103 = por %p101, %p102
      %p104 = scmp.ne.s32.totalorder %s93, %s96
      %p105 = scmp.eq.s32.totalorder %s25, 1
      %p106 = por %p104, %p105
      %p107 = scmp.ne.s32.totalorder %s96, %s97
      %p108 = scmp.eq.s32.totalorder %s25, 0
      %p109 = por %p107, %p108
      %p110 = scmp.ne.s32.totalorder %s96, %s97
      %p111 = scmp.eq.s32.totalorder %s26, 1
      %p112 = por %p110, %p111
      %p114 = scmp.ne.s32.totalorder %s97, %s113
      %p115 = scmp.eq.s32.totalorder %s26, 0
      %p116 = por %p114, %p115
      %s117 = ssub.s32 %s27, %s39
      %s118 = ssub.s32 %s28, %s35
      %s119 = sor.u32 %s117, %s118
      %p120 = scmp.eq.s32.totalorder %s119, 0
      %s122 = sadd.s32 %s121, 1
      %s123 = scalar_select %p120, %s121, %s122
      %p126 = pneg %p120
      %p127 = scmp.eq.s32.totalorder %s20, 1
      %p128 = por %p126, %p127
      %p129 = scmp.ne.s32.totalorder %s121, %s124
      %p130 = scmp.eq.s32.totalorder %s20, 0
      %p131 = por %p129, %p130
      %p132 = scmp.ne.s32.totalorder %s121, %s124
      %p133 = scmp.eq.s32.totalorder %s25, 1
      %p134 = por %p132, %p133
      %p135 = scmp.ne.s32.totalorder %s124, %s125
      %p136 = scmp.eq.s32.totalorder %s25, 0
      %p137 = por %p135, %p136
      %p138 = scmp.ne.s32.totalorder %s124, %s125
      %p139 = scmp.eq.s32.totalorder %s26, 1
      %p140 = por %p138, %p139
      %p142 = scmp.ne.s32.totalorder %s125, %s141
      %p143 = scmp.eq.s32.totalorder %s26, 0
      %p144 = por %p142, %p143
      %p145 = scmp.le.s32.totalorder 1, %s20
      %p146 = scmp.lt.s32.totalorder %s20, 3
      %p147 = pnand %p145, %p146
      %p148 = pneg %p147
      // Predicated region
      $region9: #{tpu_custom_call.1} parent=5 // pred_check
        _
      $region10: #{tpu_custom_call.1} parent=5 // pred_check_branch
        %150 = sbr.rel (%p147) target = $region12
      $region11: #{tpu_custom_call.1} parent=5 // pred_region
        %s151 = ssub.s32 %s20, 1
        // Predicated region
        $region13: #{tpu_custom_call.1} parent=11 // pred_check
          %p152 = pneg %p81
        $region14: #{tpu_custom_call.1} parent=11 // pred_check_branch
          %154 = sbr.rel (%p152) target = $region16
        $region15: #{tpu_custom_call.1} parent=11 // pred_region
          %s156 = ssub.s32 3072, 3072
          %157 = vsyncadd [#allocation6], %s156
          %s158 = sshll.u32 [#allocation5], 4
          %s159 = int_to_ptr.vmem [resolvable:$true] %s158
          %164 = dma.hbm_to_vmem [thread:$0]  %s1, 3072, %s159, [#allocation6], 192, 192, 12
        $region16: #{tpu_custom_call.1} parent=11 // pred_fallthru
          _
      $region12: #{tpu_custom_call.1} parent=5 // pred_fallthru
        _
      %p165 = scmp.lt.s32.totalorder %s20, 2
      // Predicated region
      $region17: #{tpu_custom_call.1} parent=5 // pred_check
        %p166 = pneg %p165
      $region18: #{tpu_custom_call.1} parent=5 // pred_check_branch
        %168 = sbr.rel (%p166) target = $region20
      $region19: #{tpu_custom_call.1} parent=5 // pred_region
        // Predicated region
        $region21: #{tpu_custom_call.1} parent=19 // pred_check
          %p169 = pneg %p54
        $region22: #{tpu_custom_call.1} parent=19 // pred_check_branch
          %171 = sbr.rel (%p169) target = $region24
        $region23: #{tpu_custom_call.1} parent=19 // pred_region
          %s172 = sand.u32 %s44, 1
          %s173 = scalar_lea.sflag [#allocation3], %s172
          %s174 = sand.u32 %s44, 1
          %s175 = smul.addr %s174, 8
          %s176 = scalar_lea.vmem [#allocation2], %s175
          %s177 = smul.u32 2, %s28
          %s179 = ssub.s32 128, 128
          %180 = vsyncadd %s173, %s179
          %s181 = smul.addr %s27, 2
          %s182 = sadd.s32 %s177, %s181
          %s183 = smul.addr %s182, 64
          %s184 = scalar_lea.hbm %s0, %s183
          %s185 = sshll.u32 %s176, 4
          %s186 = int_to_ptr.vmem [resolvable:$true] %s185
          %191 = dma.hbm_to_vmem [thread:$0]  %s184, 128, %s186, %s173, 64, 64, 4
        $region24: #{tpu_custom_call.1} parent=19 // pred_fallthru
          _
      $region20: #{tpu_custom_call.1} parent=5 // pred_fallthru
        _
      %p192 = scmp.le.s32.totalorder 1, %s20
      %p193 = scmp.lt.s32.totalorder %s20, 3
      %p194 = pnand %p192, %p193
      %p195 = pneg %p194
      // Predicated region
      $region25: #{tpu_custom_call.1} parent=5 // pred_check
        _
      $region26: #{tpu_custom_call.1} parent=5 // pred_check_branch
        %197 = sbr.rel (%p194) target = $region28
      $region27: #{tpu_custom_call.1} parent=5 // pred_region
        %s198 = ssub.s32 %s20, 1
        %s199 = sand.u32 %s47, 1
        %s200 = scalar_lea.sflag [#allocation3], %s199
        %s201 = sand.u32 %s47, 1
        %s202 = smul.addr %s201, 8
        %s203 = scalar_lea.vmem [#allocation2], %s202
        // Predicated region
        $region29: #{tpu_custom_call.1} parent=27 // pred_check
          %p204 = pneg %p60
        $region30: #{tpu_custom_call.1} parent=27 // pred_check_branch
          %206 = sbr.rel (%p204) target = $region32
        $region31: #{tpu_custom_call.1} parent=27 // pred_region
          %207 = dma.done %s200, 128
        $region32: #{tpu_custom_call.1} parent=27 // pred_fallthru
          _
        // Predicated region
        $region33: #{tpu_custom_call.1} parent=27 // pred_check
          %p208 = pneg %p81
        $region34: #{tpu_custom_call.1} parent=27 // pred_check_branch
          %210 = sbr.rel (%p208) target = $region36
        $region35: #{tpu_custom_call.1} parent=27 // pred_region
          %211 = dma.done [#allocation6], 3072
        $region36: #{tpu_custom_call.1} parent=27 // pred_fallthru
          _
        %s212 = sand.u32 %s47, 1
        %s213 = scalar_lea.sflag [#allocation3], %s212
        %s214 = sand.u32 %s47, 1
        %s215 = smul.addr %s214, 8
        %s216 = scalar_lea.vmem [#allocation2], %s215
        %p217 = pneg %p60
        %p218 = pneg %p57
        %p219 = pneg %p81
        %p220 = pneg %p78
        %p221 = pneg %p109
        %p222 = pneg %p106
        %s223 = sand.u32 %s96, 1
        %s224 = scalar_lea.sflag [#allocation4], %s223
        %s225 = sand.u32 %s96, 1
        %s226 = smul.addr %s225, 8
        %s227 = scalar_lea.vmem [#allocation7], %s226
        %p228 = pneg %p137
        %p229 = pneg %p134
        %s230 = sand.u32 %s124, 1
        %s231 = scalar_lea.sflag [#allocation9], %s230
        %s232 = sand.u32 %s124, 1
        %s233 = smul.addr %s232, 16
        %s234 = scalar_lea.vmem [#allocation8], %s233
        %s235 = smul.u32 2, %s30
        %s236 = smul.u32 2, %s30
        %s237 = smul.u32 2, %s30
        %v239 = vld [vmem:[%s203] sm:$0xf]
        %v240 = vld [vmem:[%s203 + $0x4] sm:$0xf]
        %v241 = vld [vmem:[#allocation5] sm:$0xff]
        %v242 = vld [vmem:[#allocation5 + $0x8] sm:$0xf]
        %v243 = vld [vmem:[#allocation5 + $0xc] sm:$0xff]
        %v244 = vld [vmem:[#allocation5 + $0x14] sm:$0xf]
        %v245 = vld [vmem:[#allocation5 + $0x18] sm:$0xff]
        %v246 = vld [vmem:[#allocation5 + $0x20] sm:$0xf]
        %v247 = vld [vmem:[#allocation5 + $0x24] sm:$0xff]
        %v248 = vld [vmem:[#allocation5 + $0x2c] sm:$0xf]
        %v249 = vld [vmem:[#allocation5 + $0x30] sm:$0xff]
        %v250 = vld [vmem:[#allocation5 + $0x38] sm:$0xf]
        %v251 = vld [vmem:[#allocation5 + $0x3c] sm:$0xff]
        %v252 = vld [vmem:[#allocation5 + $0x44] sm:$0xf]
        %v253 = vld [vmem:[#allocation5 + $0x48] sm:$0xff]
        %v254 = vld [vmem:[#allocation5 + $0x50] sm:$0xf]
        %v255 = vld [vmem:[#allocation5 + $0x54] sm:$0xff]
        %v256 = vld [vmem:[#allocation5 + $0x5c] sm:$0xf]
        %v257 = vld [vmem:[#allocation5 + $0x60] sm:$0xff]
        %v258 = vld [vmem:[#allocation5 + $0x68] sm:$0xf]
        %v259 = vld [vmem:[#allocation5 + $0x6c] sm:$0xff]
        %v260 = vld [vmem:[#allocation5 + $0x74] sm:$0xf]
        %v261 = vld [vmem:[#allocation5 + $0x78] sm:$0xff]
        %v262 = vld [vmem:[#allocation5 + $0x80] sm:$0xf]
        %v263 = vld [vmem:[#allocation5 + $0x84] sm:$0xff]
        %v264 = vld [vmem:[#allocation5 + $0x8c] sm:$0xf]
        %v265 = vld [vmem:[#allocation5 + $0x90] sm:$0xff]
        %v266 = vld [vmem:[#allocation5 + $0x98] sm:$0xf]
        %v267 = vld [vmem:[#allocation5 + $0x9c] sm:$0xff]
        %v268 = vld [vmem:[#allocation5 + $0xa4] sm:$0xf]
        %v269 = vld [vmem:[#allocation5 + $0xa8] sm:$0xff]
        %v270 = vld [vmem:[#allocation5 + $0xb0] sm:$0xf]
        %v271 = vld [vmem:[#allocation5 + $0xb4] sm:$0xff]
        %v272 = vld [vmem:[#allocation5 + $0xbc] sm:$0xf]
        %v275 = vunpack.c.l.b16 %v239
        %v276 = vunpack.c.l.b16 %v240
        %v277 = vpack.c.b16 %v276, %v275
        %v311 = vunpack.c.l.b16 %v241
        %v312 = vunpack.c.h.b16 %v241
        %v313 = vunpack.c.l.b16 %v242
        %v314 = vunpack.c.l.b16 %v243
        %v315 = vunpack.c.h.b16 %v243
        %v316 = vunpack.c.l.b16 %v244
        %v317 = vunpack.c.l.b16 %v245
        %v318 = vunpack.c.h.b16 %v245
        %v319 = vunpack.c.l.b16 %v246
        %v320 = vunpack.c.l.b16 %v247
        %v321 = vunpack.c.h.b16 %v247
        %v322 = vunpack.c.l.b16 %v248
        %v323 = vunpack.c.l.b16 %v249
        %v324 = vunpack.c.h.b16 %v249
        %v325 = vunpack.c.l.b16 %v250
        %v326 = vunpack.c.l.b16 %v251
        %v327 = vunpack.c.h.b16 %v251
        %v328 = vunpack.c.l.b16 %v252
        %v329 = vunpack.c.l.b16 %v253
        %v330 = vunpack.c.h.b16 %v253
        %v331 = vunpack.c.l.b16 %v254
        %v332 = vunpack.c.l.b16 %v255
        %v333 = vunpack.c.h.b16 %v255
        %v334 = vunpack.c.l.b16 %v256
        %v335 = vunpack.c.l.b16 %v257
        %v336 = vunpack.c.h.b16 %v257
        %v337 = vunpack.c.l.b16 %v258
        %v338 = vunpack.c.l.b16 %v259
        %v339 = vunpack.c.h.b16 %v259
        %v340 = vunpack.c.l.b16 %v260
        %v341 = vunpack.c.l.b16 %v261
        %v342 = vunpack.c.h.b16 %v261
        %v343 = vunpack.c.l.b16 %v262
        %v344 = vunpack.c.l.b16 %v263
        %v345 = vunpack.c.h.b16 %v263
        %v346 = vunpack.c.l.b16 %v264
        %v347 = vunpack.c.l.b16 %v265
        %v348 = vunpack.c.h.b16 %v265
        %v349 = vunpack.c.l.b16 %v266
        %v350 = vunpack.c.l.b16 %v267
        %v351 = vunpack.c.h.b16 %v267
        %v352 = vunpack.c.l.b16 %v268
        %v353 = vunpack.c.l.b16 %v269
        %v354 = vunpack.c.h.b16 %v269
        %v355 = vunpack.c.l.b16 %v270
        %v356 = vunpack.c.l.b16 %v271
        %v357 = vunpack.c.h.b16 %v271
        %v358 = vunpack.c.l.b16 %v272
        %v359 = vpack.c.b16 %v314, %v311
        %v360 = vpack.c.b16 %v315, %v312
        %v361 = vpack.c.b16 %v316, %v313
        %v362 = vpack.c.b16 %v320, %v317
        %v363 = vpack.c.b16 %v321, %v318
        %v364 = vpack.c.b16 %v322, %v319
        %v365 = vpack.c.b16 %v326, %v323
        %v366 = vpack.c.b16 %v327, %v324
        %v367 = vpack.c.b16 %v328, %v325
        %v368 = vpack.c.b16 %v332, %v329
        %v369 = vpack.c.b16 %v333, %v330
        %v370 = vpack.c.b16 %v334, %v331
        %v371 = vpack.c.b16 %v338, %v335
        %v372 = vpack.c.b16 %v339, %v336
        %v373 = vpack.c.b16 %v340, %v337
        %v374 = vpack.c.b16 %v344, %v341
        %v375 = vpack.c.b16 %v345, %v342
        %v376 = vpack.c.b16 %v346, %v343
        %v377 = vpack.c.b16 %v350, %v347
        %v378 = vpack.c.b16 %v351, %v348
        %v379 = vpack.c.b16 %v352, %v349
        %v380 = vpack.c.b16 %v356, %v353
        %v381 = vpack.c.b16 %v357, %v354
        %v382 = vpack.c.b16 %v358, %v355
        %407 = vmatprep.subr.bf16.mxu0 %v360
        %408 = vmatpush1.bf16.msra.mxu0 %v359
        %409 = vmatprep.subr.bf16.mxu0 %v363
        %410 = vmatpush1.bf16.msra.mxu0 %v362
        %411 = vmatprep.subr.bf16.mxu0 %v366
        %412 = vmatpush1.bf16.msra.mxu0 %v365
        %413 = vmatprep.subr.bf16.mxu0 %v369
        %414 = vmatpush1.bf16.msra.mxu0 %v368
        %415 = vmatprep.subr.bf16.mxu0 %v372
        %416 = vmatpush1.bf16.msra.mxu0 %v371
        %417 = vmatprep.subr.bf16.mxu0 %v375
        %418 = vmatpush1.bf16.msra.mxu0 %v374
        %419 = vmatprep.subr.bf16.mxu0 %v378
        %420 = vmatpush1.bf16.msra.mxu0 %v377
        %421 = vmatprep.subr.bf16.mxu0 %v381
        %422 = vmatpush1.bf16.msra.mxu0 %v380
        %423 = vmatprep.subr.bf16.mxu0 0
        %424 = vmatpush1.bf16.msra.mxu0 0
        %425 = vmatprep.subr.bf16.mxu0 0
        %426 = vmatpush1.bf16.msra.mxu0 0
        %427 = vmatprep.subr.bf16.mxu0 0
        %428 = vmatpush1.bf16.msra.mxu0 0
        %429 = vmatprep.subr.bf16.mxu0 0
        %430 = vmatpush1.bf16.msra.mxu0 0
        %431 = vmatprep.subr.bf16.mxu0 0
        %432 = vmatpush1.bf16.msra.mxu0 0
        %433 = vmatprep.subr.bf16.mxu0 0
        %434 = vmatpush1.bf16.msra.mxu0 0
        %435 = vmatprep.subr.bf16.mxu0 0
        %436 = vmatpush1.bf16.msra.mxu0 0
        %437 = vmatprep.subr.bf16.mxu0 0
        %438 = vmatpush1.bf16.msra.mxu0 0
        %439 = vmatprep.mubr.bf16.mxu0 0
        %440 = vmatmul.mubr.bf16.gmra.mrb[0].mxu0 %v277
        %v441 = vpop.f32.mrb[0].mxu0
        %v442 = vadd.f32 0.0, %v441
        %v443 = vpop.f32.mrb[0].mxu0
        %v444 = vadd.f32 0.0, %v443
        %v445 = vpop.f32.mrb[0].mxu0
        %v446 = vadd.f32 0.0, %v445
        %v447 = vpop.f32.mrb[0].mxu0
        %v448 = vadd.f32 0.0, %v447
        %449 = vdwg.mxu0
        %450 = vmatprep.subr.bf16.mxu0 0
        %451 = vmatpush1.bf16.msra.mxu0 %v361
        %452 = vmatprep.subr.bf16.mxu0 0
        %453 = vmatpush1.bf16.msra.mxu0 %v364
        %454 = vmatprep.subr.bf16.mxu0 0
        %455 = vmatpush1.bf16.msra.mxu0 %v367
        %456 = vmatprep.subr.bf16.mxu0 0
        %457 = vmatpush1.bf16.msra.mxu0 %v370
        %458 = vmatprep.subr.bf16.mxu0 0
        %459 = vmatpush1.bf16.msra.mxu0 %v373
        %460 = vmatprep.subr.bf16.mxu0 0
        %461 = vmatpush1.bf16.msra.mxu0 %v376
        %462 = vmatprep.subr.bf16.mxu0 0
        %463 = vmatpush1.bf16.msra.mxu0 %v379
        %464 = vmatprep.subr.bf16.mxu0 0
        %465 = vmatpush1.bf16.msra.mxu0 %v382
        %466 = vmatprep.subr.bf16.mxu0 0
        %467 = vmatpush1.bf16.msra.mxu0 0
        %468 = vmatprep.subr.bf16.mxu0 0
        %469 = vmatpush1.bf16.msra.mxu0 0
        %470 = vmatprep.subr.bf16.mxu0 0
        %471 = vmatpush1.bf16.msra.mxu0 0
        %472 = vmatprep.subr.bf16.mxu0 0
        %473 = vmatpush1.bf16.msra.mxu0 0
        %474 = vmatprep.subr.bf16.mxu0 0
        %475 = vmatpush1.bf16.msra.mxu0 0
        %476 = vmatprep.subr.bf16.mxu0 0
        %477 = vmatpush1.bf16.msra.mxu0 0
        %478 = vmatprep.subr.bf16.mxu0 0
        %479 = vmatpush1.bf16.msra.mxu0 0
        %480 = vmatprep.subr.bf16.mxu0 0
        %481 = vmatpush1.bf16.msra.mxu0 0
        %482 = vmatprep.mubr.bf16.mxu0 0
        %483 = vmatmul.mubr.bf16.gmra.mrb[0].mxu0 %v277
        %v484 = vpop.f32.mrb[0].mxu0
        %v485 = vadd.f32 0.0, %v484
        %v486 = vpop.f32.mrb[0].mxu0
        %v487 = vpop.f32.mrb[0].mxu0
        %v488 = vadd.f32 0.0, %v487
        %v489 = vpop.f32.mrb[0].mxu0
        %490 = vdwg.mxu0
        %v491 = vpack.c.bf16 %v446, %v442
        %v493 = vunpack.c.l.b16 %v491
        %v494 = vunpack.c.h.b16 %v491
        %v495 = vpack.c.b16 %v493, %v493
        %v496 = vpack.c.b16 %v494, %v494
        %499 = vst [vmem:[%s227] sm:$0xf] %v495
        %500 = vst [vmem:[%s227 + $0x4] sm:$0xf] %v496
        %v501 = vpack.c.bf16 %v448, %v444
        %v502 = vpack.c.bf16 %v488, %v485
        %v505 = vunpack.c.l.b16 %v501
        %v506 = vunpack.c.l.b16 %v502
        %v507 = vunpack.c.h.b16 %v501
        %v508 = vunpack.c.h.b16 %v502
        %v509 = vpack.c.b16 %v506, %v505
        %v510 = vpack.c.b16 %v508, %v507
        %513 = vst [vmem:[%s234] sm:$0xff] %v509
        %514 = vst [vmem:[%s234 + $0x8] sm:$0xff] %v510
        %s515 = sand.u32 %s96, 1
        %s516 = scalar_lea.sflag [#allocation4], %s515
        %s517 = sand.u32 %s96, 1
        %s518 = smul.addr %s517, 8
        %s519 = scalar_lea.vmem [#allocation7], %s518
        %s520 = sand.u32 %s124, 1
        %s521 = scalar_lea.sflag [#allocation9], %s520
        %s522 = sand.u32 %s124, 1
        %s523 = smul.addr %s522, 16
        %s524 = scalar_lea.vmem [#allocation8], %s523
        // Predicated region
        $region37: #{tpu_custom_call.1} parent=27 // pred_check
          %p525 = pneg %p106
        $region38: #{tpu_custom_call.1} parent=27 // pred_check_branch
          %527 = sbr.rel (%p525) target = $region40
        $region39: #{tpu_custom_call.1} parent=27 // pred_region
          %s528 = smul.u32 2, %s30
          %s530 = ssub.s32 128, 128
          %531 = vsyncadd %s516, %s530
          %s532 = smul.addr %s29, 2
          %s533 = sadd.s32 %s528, %s532
          %s534 = smul.addr %s533, 64
          %s535 = scalar_lea.hbm %s2, %s534
          %s536 = sshll.u32 %s519, 4
          %s537 = int_to_ptr.vmem [resolvable:$true] %s536
          %542 = dma.vmem_to_hbm [thread:$0]  %s537, 128, %s535, %s516, 64, 64, 4
        $region40: #{tpu_custom_call.1} parent=27 // pred_fallthru
          _
        // Predicated region
        $region41: #{tpu_custom_call.1} parent=27 // pred_check
          %p543 = pneg %p134
        $region42: #{tpu_custom_call.1} parent=27 // pred_check_branch
          %545 = sbr.rel (%p543) target = $region44
        $region43: #{tpu_custom_call.1} parent=27 // pred_region
          %s546 = smul.u32 2, %s30
          %s548 = ssub.s32 256, 256
          %549 = vsyncadd %s521, %s548
          %s550 = smul.addr %s546, 2
          %s551 = smul.addr %s29, 4
          %s552 = sadd.s32 %s550, %s551
          %s553 = smul.addr %s552, 64
          %s554 = scalar_lea.hbm %s3, %s553
          %s555 = sshll.u32 %s524, 4
          %s556 = int_to_ptr.vmem [resolvable:$true] %s555
          %561 = dma.vmem_to_hbm [thread:$0]  %s556, 256, %s554, %s521, 128, 128, 8
        $region44: #{tpu_custom_call.1} parent=27 // pred_fallthru
          _
      $region28: #{tpu_custom_call.1} parent=5 // pred_fallthru
        _
      %p562 = scmp.le.s32.totalorder 2, %s20
      // Predicated region
      $region45: #{tpu_custom_call.1} parent=5 // pred_check
        %p563 = pneg %p562
      $region46: #{tpu_custom_call.1} parent=5 // pred_check_branch
        %565 = sbr.rel (%p563) target = $region48
      $region47: #{tpu_custom_call.1} parent=5 // pred_region
        %s566 = ssub.s32 %s20, 2
        // Predicated region
        $region49: #{tpu_custom_call.1} parent=47 // pred_check
          %p567 = pneg %p112
        $region50: #{tpu_custom_call.1} parent=47 // pred_check_branch
          %569 = sbr.rel (%p567) target = $region52
        $region51: #{tpu_custom_call.1} parent=47 // pred_region
          %s570 = sand.u32 %s97, 1
          %s571 = scalar_lea.sflag [#allocation4], %s570
          %s572 = sand.u32 %s97, 1
          %s573 = smul.addr %s572, 8
          %s574 = scalar_lea.vmem [#allocation7], %s573
          %575 = dma.done %s571, 128
        $region52: #{tpu_custom_call.1} parent=47 // pred_fallthru
          _
        // Predicated region
        $region53: #{tpu_custom_call.1} parent=47 // pred_check
          %p576 = pneg %p140
        $region54: #{tpu_custom_call.1} parent=47 // pred_check_branch
          %578 = sbr.rel (%p576) target = $region56
        $region55: #{tpu_custom_call.1} parent=47 // pred_region
          %s579 = sand.u32 %s125, 1
          %s580 = scalar_lea.sflag [#allocation9], %s579
          %s581 = sand.u32 %s125, 1
          %s582 = smul.addr %s581, 16
          %s583 = scalar_lea.vmem [#allocation8], %s582
          %584 = dma.done %s580, 256
        $region56: #{tpu_custom_call.1} parent=47 // pred_fallthru
          _
      $region48: #{tpu_custom_call.1} parent=5 // pred_fallthru
        _
    $region6: #{tpu_custom_call.1} parent=1 // loop_footer
      %s24 = sadd.s32 1, %s20
    $region7: #{tpu_custom_call.1} parent=1 // loop_footer_branch
      %19 = sbr.rel target = $region3
    $region8: #{tpu_custom_call.1} parent=1 // loop_exit
      _
    %585 = vsyncpa [#allocation3], 1
    %s586 = scalar_lea.sflag [#allocation3], 1
    %587 = vsyncpa %s586, 1
    %588 = vsyncpa [#allocation6], 1
    %589 = vsyncpa [#allocation4], 1
    %s590 = scalar_lea.sflag [#allocation4], 1
    %591 = vsyncpa %s590, 1
    %592 = vsyncpa [#allocation9], 1
    %s593 = scalar_lea.sflag [#allocation9], 1
    %594 = vsyncpa %s593, 1

</llo_original>
